<compile_context>
chip_gen: v7x
topology: tpu7x:2x2x1
jax: 0.10.0
libtpu: 0.0.40
codegen_flags: <defaults>
</compile_context>

<pallas_src>
import functools

import jax
import jax.numpy as jnp
from jax.experimental import pallas as pl
from jax.experimental.pallas import tpu as pltpu


def _cvn_kernel(x_ref, g_ref, o_ref, *, hw, eps):
    # x_ref: (TR, HW) tile of per-(n,c) spatial planes.  g_ref: (TR, 1) f32 gamma.
    x = x_ref[...].astype(jnp.float32)  # f32 accumulation (required on v5e anyway)
    gamma = g_ref[...]

    # One-pass unbiased variance (ddof=1) from sum and sum-of-squares: avoids a
    # full-tile `x - mean` VMEM temporary and a second full-tile VALU/vld pass,
    # which converts directly into larger streaming blocks.
    s = jnp.sum(x, axis=-1, keepdims=True)
    ss = jnp.sum(x * x, axis=-1, keepdims=True)
    mean = s * (1.0 / hw)
    var = (ss - s * mean) * (1.0 / max(hw - 1, 1))
    var = jnp.maximum(var, 0.0)  # guard round-off cancellation (E[x^2]-E[x]^2)

    inv = jax.lax.rsqrt(var + eps)  # EUP slot: free filler in a mem-bound kernel
    o_ref[...] = (gamma * inv * x).astype(o_ref.dtype)


def _vmem_limit_bytes():
    """Per-generation scoped-VMEM limit: never hand Mosaic the full v7x VMEM."""
    phys = 64 * 1024 * 1024  # conservative default (v7x per-TC physical)
    try:
        phys = int(getattr(pltpu.get_tpu_info(), "vmem_capacity_bytes", phys))
    except Exception:
        pass
    if phys <= 64 * 1024 * 1024:
        return 48 * 1024 * 1024  # v7x: leave headroom for internal scratch
    return 96 * 1024 * 1024      # v5e/v6e: 128 MiB physical -> allow big tiles


def _choose_row_tile(rows, hw, itemsize, vmem_limit):
    """Pick the row-tile size (and whether to drop to single buffering)."""
    # Sublane alignment by dtype packing (f32 -> 8, bf16 -> 16, int8/fp8 -> 32).
    if itemsize >= 4:
        align = 8
    elif itemsize == 2:
        align = 16
    else:
        align = 32

    # ~8 MiB of input per block: streaming kernels only reach ~85% of the HBM
    # roofline with >=4-8 MiB blocks; smaller blocks expose per-step overhead.
    target_block_bytes = 8 * 1024 * 1024
    tr_target = max(1, target_block_bytes // max(hw * itemsize, 1))

    # VMEM accounting: double-buffered input + output plus ~2 full-tile f32
    # compute temporaries; keep it under ~2/3 of the scoped limit.
    per_row_live = hw * (2 * itemsize + 2 * itemsize + 2 * 4)
    budget = (2 * vmem_limit) // 3
    tr_budget = max(1, budget // max(per_row_live, 1))

    tr = min(tr_target, tr_budget)
    tr = max(align, (tr // align) * align)

    # Very large H*W guard: even `align` rows may not fit double-buffered.
    single_buffer = tr == align and align * per_row_live > budget

    if tr >= rows:
        tr = rows  # full extent: no (8,128) divisibility constraint
    else:
        # Keep >= ~8 grid steps so v7x's two TensorCores both get work and the
        # DMA/compute pipeline stays deep (no effect on single-TC v5e/v6e).
        min_blocks = 8
        max_tr = rows // min_blocks
        if max_tr >= align:
            tr = min(tr, (max_tr // align) * align)
    return tr, single_buffer


def conditional_variance_norm2d(x, y, embed_weight, eps=1e-5):
    """out = embed_weight[y][:, :, None, None] * x / sqrt(Var_{H,W}(x) + eps)."""
    n, c, h, w = x.shape
    hw = h * w
    rows = n * c

    # Class-conditional gamma, one f32 scalar per (n, c) row.  Kept in f32 so a
    # bf16 x does not round the embedding weights (matches PyTorch); the tiny
    # gather (N*C elements) is done in the wrapper and streamed as a column.
    gamma_rows = embed_weight[y].reshape(rows, 1).astype(jnp.float32)

    x2d = x.reshape(rows, hw)  # rows = (n, c) planes, lanes = H*W

    vmem_limit = _vmem_limit_bytes()
    tr, single_buffer = _choose_row_tile(rows, hw, x.dtype.itemsize, vmem_limit)
    grid = (pl.cdiv(rows, tr),)

    def big_spec(shape, imap):
        if single_buffer:
            # Huge H*W: a single row-group barely fits; disable double buffering.
            return pl.BlockSpec(shape, imap, pipeline_mode=pl.Buffered(1))
        return pl.BlockSpec(shape, imap)

    kernel = functools.partial(_cvn_kernel, hw=hw, eps=eps)

    out2d = pl.pallas_call(
        kernel,
        out_shape=jax.ShapeDtypeStruct((rows, hw), x.dtype),
        grid=grid,
        in_specs=[
            big_spec((tr, hw), lambda i: (i, 0)),
            pl.BlockSpec((tr, 1), lambda i: (i, 0)),
        ],
        out_specs=big_spec((tr, hw), lambda i: (i, 0)),
        compiler_params=pltpu.CompilerParams(
            dimension_semantics=("parallel",),  # rows independent; shards v7x's 2 TCs
            vmem_limit_bytes=vmem_limit,
        ),
    )(x2d, gamma_rows)

    return out2d.reshape(n, c, h, w)


if __name__ == "__main__":
    key = jax.random.PRNGKey(0)
    kx, ky, ke = jax.random.split(key, 3)

    N, C, H, W = 2, 4, 16, 16
    num_classes = 10

    x = jax.random.normal(kx, (N, C, H, W), dtype=jnp.float32)
    y = jax.random.randint(ky, (N,), 0, num_classes)
    embed_weight = 1.0 + 0.02 * jax.random.normal(
        ke, (num_classes, C), dtype=jnp.float32
    )

    out = conditional_variance_norm2d(x, y, embed_weight)
    jax.block_until_ready(out)

    # Pure-JAX reference (torch.var default is unbiased -> ddof=1).
    var_ref = jnp.var(x, axis=(2, 3), keepdims=True, ddof=1)
    h_ref = x / jnp.sqrt(var_ref + 1e-5)
    ref = embed_weight[y].reshape(N, C, 1, 1) * h_ref

    assert out.shape == x.shape and out.dtype == x.dtype
    assert jnp.allclose(out, ref, atol=1e-5, rtol=1e-5)
    print("KERNEL_OK")
</pallas_src>

<mosaic_0001>
module attributes {stable_mosaic.version = 11 : i64} {
  func.func @_cvn_kernel(%arg0: i32, %arg1: memref<8x256xf32, #tpu.memory_space<vmem>>, %arg2: memref<8x1xf32, #tpu.memory_space<vmem>>, %arg3: memref<8x256xf32, #tpu.memory_space<vmem>>) attributes {dimension_semantics = [#tpu.dimension_semantics<parallel>], iteration_bounds = array<i64: 1>, scalar_prefetch = 0 : i64, scratch_operands = 0 : i64, tpu.core_type = #tpu.core_type<tc>, window_params = [{transform_indices = @transform_0, window_bounds = array<i64: 8, 256>}, {transform_indices = @transform_1, window_bounds = array<i64: 8, 1>}, {transform_indices = @transform_2, window_bounds = array<i64: 8, 256>}]} {
    %c0 = arith.constant 0 : index
    %c0_0 = arith.constant 0 : index
    %0 = vector.load %arg1[%c0, %c0_0] : memref<8x256xf32, #tpu.memory_space<vmem>>, vector<8x256xf32>
    %c0_1 = arith.constant 0 : index
    %c0_2 = arith.constant 0 : index
    %1 = vector.load %arg2[%c0_1, %c0_2] : memref<8x1xf32, #tpu.memory_space<vmem>>, vector<8x1xf32>
    %cst = arith.constant dense<0.000000e+00> : vector<8xf32>
    %2 = vector.multi_reduction <add>, %0, %cst [1] : vector<8x256xf32> to vector<8xf32>
    %3 = vector.shape_cast %2 : vector<8xf32> to vector<8x1xf32>
    %4 = arith.mulf %0, %0 : vector<8x256xf32>
    %cst_3 = arith.constant dense<0.000000e+00> : vector<8xf32>
    %5 = vector.multi_reduction <add>, %4, %cst_3 [1] : vector<8x256xf32> to vector<8xf32>
    %6 = vector.shape_cast %5 : vector<8xf32> to vector<8x1xf32>
    %cst_4 = arith.constant 3.906250e-03 : f32
    %7 = vector.broadcast %cst_4 : f32 to vector<8x1xf32>
    %8 = arith.mulf %3, %7 : vector<8x1xf32>
    %9 = arith.mulf %3, %8 : vector<8x1xf32>
    %10 = arith.subf %6, %9 : vector<8x1xf32>
    %cst_5 = arith.constant 0.00392156886 : f32
    %11 = vector.broadcast %cst_5 : f32 to vector<8x1xf32>
    %12 = arith.mulf %10, %11 : vector<8x1xf32>
    %cst_6 = arith.constant 0.000000e+00 : f32
    %13 = vector.broadcast %cst_6 : f32 to vector<8x1xf32>
    %14 = arith.maximumf %12, %13 : vector<8x1xf32>
    %cst_7 = arith.constant 9.99999974E-6 : f32
    %15 = vector.broadcast %cst_7 : f32 to vector<8x1xf32>
    %16 = arith.addf %14, %15 : vector<8x1xf32>
    %17 = math.rsqrt %16 : vector<8x1xf32>
    %18 = arith.mulf %1, %17 : vector<8x1xf32>
    %19 = vector.broadcast %18 : vector<8x1xf32> to vector<8x256xf32>
    %20 = arith.mulf %19, %0 : vector<8x256xf32>
    %c0_8 = arith.constant 0 : index
    %c0_9 = arith.constant 0 : index
    %21 = vector.load %arg3[%c0_8, %c0_9] : memref<8x256xf32, #tpu.memory_space<vmem>>, vector<8x256xf32>
    tpu.vector_store %arg3[%c0_8, %c0_9], %20 {strides = array<i32>} : memref<8x256xf32, #tpu.memory_space<vmem>>, vector<8x256xf32>,
    return
  }
  func.func @transform_0(%arg0: i32) -> (i32, i32) {
    %c0_i32 = arith.constant 0 : i32
    %c0_i32_0 = arith.constant 0 : i32
    return %arg0, %c0_i32 : i32, i32
  }
  func.func @transform_1(%arg0: i32) -> (i32, i32) {
    %c0_i32 = arith.constant 0 : i32
    %c0_i32_0 = arith.constant 0 : i32
    return %arg0, %c0_i32 : i32, i32
  }
  func.func @transform_2(%arg0: i32) -> (i32, i32) {
    %c0_i32 = arith.constant 0 : i32
    %c0_i32_0 = arith.constant 0 : i32
    return %arg0, %c0_i32 : i32, i32
  }
}

</mosaic_0001>

<llo_original>
// kernel: tpu_custom_call.1
$region0: #{tpu_custom_call.1}
  #allocation0 [shape = 'u32[]', space=smem, size = 0x4, offset = 0x4, fixed_abs, tag = 'smem constant byte address 0x4 - core index']
  #allocation1 [shape = 'u32[144,128]{1,0:T(1,128)}', space=vmem, size = 0x12000, scoped, tag = 'internal scratch']
  %s0 = inlined_call_operand.hbm [shape: f32[8,256], index: 0, kind: input, shape index: {}]
  %s1 = inlined_call_operand.vmem [shape: f32[8,1], index: 1, kind: input, shape index: {}]
  %s2 = inlined_call_operand.hbm [shape: f32[8,256], index: 2, kind: output, shape index: {}]
  %s3 = sld [smem:[#allocation0]]
  $region22: #{tpu_custom_call.1} parent=0
    _
  %s5 = ssub.s32 1, %s3
  %s6 = scalar_select 0, %s5, %s3
  $region1: #{tpu_custom_call.1} parent=0
    #allocation2 [shape = 'u8[8192]{0}', space=vmem, size = 0x2000, scoped, tag = 'input window, operand 0, single buffered']
    #allocation3 [shape = 's32[1]{0}', space=sflag, size = 0x4, scoped, tag = 'scoped memory for tpu_custom_call.1']
    #allocation4 [shape = 's32[1]{0}', space=sflag, size = 0x4, scoped, tag = 'scoped memory for tpu_custom_call.1']
    #allocation5 [shape = 'u8[8192]{0}', space=vmem, size = 0x2000, scoped, tag = 'output window, operand 0, single buffered']
    %7 = vsyncpa [#allocation3], 0
    %8 = vsyncpa [#allocation4], 0
    // Predicated region
    $region2: #{tpu_custom_call.1} parent=1 // pred_check
      _
    $region3: #{tpu_custom_call.1} parent=1 // pred_check_branch
      %10 = sbr.rel (0) target = $region5
    $region4: #{tpu_custom_call.1} parent=1 // pred_region
      %s12 = ssub.s32 256, 256
      %13 = vsyncadd [#allocation3], %s12
      %s15 = sshll.u32 [#allocation2], 4
      %s16 = int_to_ptr.vmem [resolvable:$true] %s15
      %18 = dma.hbm_to_vmem [thread:$0]  %s0, 256, %s16, [#allocation3]
    $region5: #{tpu_custom_call.1} parent=1 // pred_fallthru
      _
    // Predicated region
    $region6: #{tpu_custom_call.1} parent=1 // pred_check
      _
    $region7: #{tpu_custom_call.1} parent=1 // pred_check_branch
      %20 = sbr.rel (0) target = $region9
    $region8: #{tpu_custom_call.1} parent=1 // pred_region
      _
    $region9: #{tpu_custom_call.1} parent=1 // pred_fallthru
      _
    // Predicated region
    $region10: #{tpu_custom_call.1} parent=1 // pred_check
      _
    $region11: #{tpu_custom_call.1} parent=1 // pred_check_branch
      %22 = sbr.rel (0) target = $region13
    $region12: #{tpu_custom_call.1} parent=1 // pred_region
      %23 = dma.done [#allocation3], 256
    $region13: #{tpu_custom_call.1} parent=1 // pred_fallthru
      _
    %v24 = vld [vmem:[#allocation2] sm:$0xff]
    %v25 = vld [vmem:[#allocation2 + $0x8] sm:$0xff]
    %v26 = vld [vmem:[%s1] sm:$0xff]
    %v27 = vadd.f32 %v24, %v25
    %28 = vadd.xlane.f32.xlu0 %v27
    %v29 = vpop.xlane.xlu0 %28
    %v30 = vmul.f32 %v24, %v24
    %v31 = vmul.f32 %v25, %v25
    %v32 = vadd.f32 %v30, %v31
    %33 = vadd.xlane.f32.xlu0 %v32
    %v34 = vpop.xlane.xlu0 %33
    %v35 = vmul.f32 %v29, 0.00390625
    %v36 = vmul.f32 %v29, %v35
    %v37 = vsub.f32 %v34, %v36
    %v38 = vmul.f32 %v37, 0.003921569
    %v39 = vmax.f32 %v38, 0.0
    %v40 = vadd.f32 %v39, 1e-05
    %v41 = vrsqrt.pop %v40
    %v42 = vmul.f32 %v26, %v41
    %44 = vset.pattern.permute.xlu0 0
    %45 = vperm.xlu0 %44, %v42
    %v46 = vpop.permute.xlu0 %45
    %v48 = vmul.f32 %v46, %v24
    %v49 = vmul.f32 %v46, %v25
    %50 = vst [vmem:[#allocation5] sm:$0xff] %v48
    %51 = vst [vmem:[#allocation5 + $0x8] sm:$0xff] %v49
    // Predicated region
    $region14: #{tpu_custom_call.1} parent=1 // pred_check
      _
    $region15: #{tpu_custom_call.1} parent=1 // pred_check_branch
      %53 = sbr.rel (0) target = $region17
    $region16: #{tpu_custom_call.1} parent=1 // pred_region
      %s55 = ssub.s32 256, 256
      %56 = vsyncadd [#allocation4], %s55
      %s58 = sshll.u32 [#allocation5], 4
      %s59 = int_to_ptr.vmem [resolvable:$true] %s58
      %61 = dma.vmem_to_hbm [thread:$0]  %s59, 256, %s2, [#allocation4]
    $region17: #{tpu_custom_call.1} parent=1 // pred_fallthru
      _
    // Predicated region
    $region18: #{tpu_custom_call.1} parent=1 // pred_check
      _
    $region19: #{tpu_custom_call.1} parent=1 // pred_check_branch
      %63 = sbr.rel (0) target = $region21
    $region20: #{tpu_custom_call.1} parent=1 // pred_region
      %64 = dma.done [#allocation4], 256
    $region21: #{tpu_custom_call.1} parent=1 // pred_fallthru
      _
    %65 = vsyncpa [#allocation3], 1
    %66 = vsyncpa [#allocation4], 1

</llo_original>
